<compile_context>
chip_gen: v5e
topology: v5e:2x2
jax: 0.10.0
libtpu: 0.0.40
codegen_flags: <defaults>
</compile_context>

<pallas_src>
import functools
import math

import jax
import jax.numpy as jnp
from jax.experimental import pallas as pl
from jax.experimental.pallas import tpu as pltpu

LEAKY_SLOPE = 0.05           # nn.LeakyReLU(0.05)
MATMUL_DTYPE = jnp.bfloat16  # MXU operand dtype (f32 accumulation kept)


def _round_up(x, m):
    return ((x + m - 1) // m) * m


# ------------------------------ fused MLP kernel ------------------------------

def _fused_mlp_kernel(x_ref, *rest, n_linear, act, negative_slope):
    """Entire MLP forward on one (TILE_M, in_pad) row-tile; weights resident in VMEM.

    rest = (w0, b0, w1, b1, ..., w_{L-1}, b_{L-1}, out_ref)
    """
    o_ref = rest[-1]
    wb_refs = rest[:-1]

    h = x_ref[...]  # f32 (TILE_M, in_pad)
    for li in range(n_linear):
        w = wb_refs[2 * li][...]        # bf16 (K_pad, N_pad), zero padded
        b = wb_refs[2 * li + 1][...]    # f32  (1, N_pad)
        # bf16 operands, f32 accumulation on the MXU.
        y = jnp.dot(h.astype(w.dtype), w, preferred_element_type=jnp.float32) + b
        if li < n_linear - 1:           # activation after every hidden Linear only
            if act == "leakyrelu":
                y = jnp.where(y >= 0, y, negative_slope * y)
            elif act == "relu":
                y = jnp.maximum(y, 0.0)
            elif act == "tanh":
                y = jnp.tanh(y)
            elif act == "sigmoid":
                y = jax.nn.sigmoid(y)
            else:
                raise NotImplementedError(act)
        h = y
    o_ref[...] = h.astype(o_ref.dtype)


def mlp_forward(params, x, *, act="leakyrelu", negative_slope=LEAKY_SLOPE,
                matmul_dtype=MATMUL_DTYPE, max_tile_m=256):
    """params: list of (w:(K,N) f32, b:(N,) f32). x: (..., in_dim) -> (..., out_dim)."""
    orig_lead = x.shape[:-1]
    in_dim = x.shape[-1]
    x2 = x.reshape(-1, in_dim).astype(jnp.float32)
    M = x2.shape[0]

    n_linear = len(params)
    dims = [in_dim] + [w.shape[1] for (w, _) in params]
    assert params[0][0].shape[0] == in_dim, "x feature dim must match first Linear"
    pdims = [_round_up(d, 128) for d in dims]            # lane-dense feature dims
    out_dim, out_pad = dims[-1], pdims[-1]

    # Pad weights/biases once; weights stored bf16 (halves weight DMA bytes).
    packed = []
    for li, (w, b) in enumerate(params):
        kp, np_ = pdims[li], pdims[li + 1]
        wp = jnp.zeros((kp, np_), matmul_dtype).at[:w.shape[0], :w.shape[1]].set(
            w.astype(matmul_dtype))
        bp = jnp.zeros((1, np_), jnp.float32).at[0, :b.shape[0]].set(
            b.astype(jnp.float32))
        packed += [wp, bp]

    # Row tile: sublane-aligned, bounded to a conservative VMEM budget (v7x-safe).
    VMEM_BUDGET = 24 * 1024 * 1024
    wb_bytes = sum(pdims[i] * pdims[i + 1] * jnp.dtype(matmul_dtype).itemsize
                   + pdims[i + 1] * 4 for i in range(n_linear))

    def _vmem_estimate(tm):
        io = 2 * tm * (pdims[0] + pdims[-1]) * 4          # double-buffered x / out tiles
        acts = 3 * tm * max(pdims) * 4                    # intermediate activations headroom
        return 2 * wb_bytes + io + acts

    tile_m = max(8, min(_round_up(M, 8), _round_up(max_tile_m, 8)))
    while tile_m > 8 and _vmem_estimate(tile_m) > VMEM_BUDGET:
        tile_m -= 8
    if _vmem_estimate(8) > VMEM_BUDGET:
        # TODO(synk): very large hidden dims would need a K/N-tiled accumulator grid.
        raise ValueError("MLP weights too large for single-tile VMEM-resident kernel")

    M_pad = _round_up(M, tile_m)
    xp = jnp.zeros((M_pad, pdims[0]), jnp.float32).at[:M, :in_dim].set(x2)

    x_spec = pl.BlockSpec((tile_m, pdims[0]), lambda i: (i, 0))
    wb_specs = []
    for li in range(n_linear):
        wb_specs.append(pl.BlockSpec((pdims[li], pdims[li + 1]), lambda i: (0, 0)))
        wb_specs.append(pl.BlockSpec((1, pdims[li + 1]), lambda i: (0, 0)))
    out_spec = pl.BlockSpec((tile_m, out_pad), lambda i: (i, 0))

    out = pl.pallas_call(
        functools.partial(_fused_mlp_kernel, n_linear=n_linear, act=act,
                          negative_slope=negative_slope),
        out_shape=jax.ShapeDtypeStruct((M_pad, out_pad), jnp.float32),
        grid=(M_pad // tile_m,),
        in_specs=[x_spec] + wb_specs,
        out_specs=out_spec,
        compiler_params=pltpu.CompilerParams(
            dimension_semantics=("parallel",),            # shard row tiles across TCs (v7x)
            vmem_limit_bytes=32 * 1024 * 1024),
    )(xp, *packed)

    return out[:M, :out_dim].reshape(*orig_lead, out_dim)


# --------------------------------- init / ref ---------------------------------

def init_mlp(key, in_dim, n_hid, out_dim, n_layer):
    """Matches MLP.__init__: n_layer hidden Linear+act blocks + final Linear.

    Weights: xavier_uniform (init_weights). Biases: PyTorch nn.Linear default init.
    Weight layout is (in, out); forward computes x @ W + b (equivalent formulation).
    """
    dims = [(in_dim, n_hid)] + [(n_hid, n_hid)] * (n_layer - 1) + [(n_hid, out_dim)]
    keys = jax.random.split(key, len(dims))
    params = []
    for k, (di, do) in zip(keys, dims):
        kw, kb = jax.random.split(k)
        limit = math.sqrt(6.0 / (di + do))
        w = jax.random.uniform(kw, (di, do), jnp.float32, -limit, limit)
        bound = 1.0 / math.sqrt(di)
        b = jax.random.uniform(kb, (do,), jnp.float32, -bound, bound)
        params.append((w, b))
    return params


def mlp_reference(params, x, *, act="leakyrelu", negative_slope=LEAKY_SLOPE):
    """Pure-JAX f32 reference of the PyTorch MLP forward."""
    h = x.reshape(-1, x.shape[-1]).astype(jnp.float32)
    for li, (w, b) in enumerate(params):
        h = h @ w + b
        if li < len(params) - 1:
            if act == "leakyrelu":
                h = jnp.where(h >= 0, h, negative_slope * h)
            elif act == "relu":
                h = jnp.maximum(h, 0.0)
            elif act == "tanh":
                h = jnp.tanh(h)
            elif act == "sigmoid":
                h = jax.nn.sigmoid(h)
    return h.reshape(*x.shape[:-1], params[-1][0].shape[1])


# ------------------------------------ main -------------------------------------

if __name__ == "__main__":
    B = 2
    in_dim = 16
    n_hid = 32
    out_dim = 8
    n_layer = 2

    root = jax.random.PRNGKey(0)
    k_param, k_x = jax.random.split(root)

    params = init_mlp(k_param, in_dim, n_hid, out_dim, n_layer)
    x = jax.random.normal(k_x, (B, in_dim), jnp.float32)

    y = mlp_forward(params, x)
    y = jax.block_until_ready(y)

    assert y.shape == (B, out_dim), (y.shape, (B, out_dim))
    assert bool(jnp.all(jnp.isfinite(y)))

    # Check against the f32 reference; tolerance covers bf16 MXU operands (f32 accum).
    y_ref = mlp_reference(params, x)
    max_err = float(jnp.max(jnp.abs(y - y_ref)))
    assert bool(jnp.allclose(y, y_ref, rtol=5e-2, atol=5e-2)), max_err

    print("KERNEL_OK")
</pallas_src>

<mosaic_0001>
module attributes {stable_mosaic.version = 11 : i64} {
  func.func @_fused_mlp_kernel(%arg0: i32, %arg1: memref<8x128xf32, #tpu.memory_space<vmem>>, %arg2: memref<128x128xbf16, #tpu.memory_space<vmem>>, %arg3: memref<1x128xf32, #tpu.memory_space<vmem>>, %arg4: memref<128x128xbf16, #tpu.memory_space<vmem>>, %arg5: memref<1x128xf32, #tpu.memory_space<vmem>>, %arg6: memref<128x128xbf16, #tpu.memory_space<vmem>>, %arg7: memref<1x128xf32, #tpu.memory_space<vmem>>, %arg8: memref<8x128xf32, #tpu.memory_space<vmem>>) attributes {dimension_semantics = [#tpu.dimension_semantics<parallel>], iteration_bounds = array<i64: 1>, scalar_prefetch = 0 : i64, scratch_operands = 0 : i64, tpu.core_type = #tpu.core_type<tc>, window_params = [{transform_indices = @transform_0, window_bounds = array<i64: 8, 128>}, {pipeline_mode = #tpu.pipeline_mode<synchronous>, transform_indices = @transform_1, window_bounds = array<i64: 128, 128>}, {pipeline_mode = #tpu.pipeline_mode<synchronous>, transform_indices = @transform_2, window_bounds = array<i64: 1, 128>}, {pipeline_mode = #tpu.pipeline_mode<synchronous>, transform_indices = @transform_3, window_bounds = array<i64: 128, 128>}, {pipeline_mode = #tpu.pipeline_mode<synchronous>, transform_indices = @transform_4, window_bounds = array<i64: 1, 128>}, {pipeline_mode = #tpu.pipeline_mode<synchronous>, transform_indices = @transform_5, window_bounds = array<i64: 128, 128>}, {pipeline_mode = #tpu.pipeline_mode<synchronous>, transform_indices = @transform_6, window_bounds = array<i64: 1, 128>}, {transform_indices = @transform_7, window_bounds = array<i64: 8, 128>}]} {
    %c0 = arith.constant 0 : index
    %c0_0 = arith.constant 0 : index
    %0 = vector.load %arg1[%c0, %c0_0] : memref<8x128xf32, #tpu.memory_space<vmem>>, vector<8x128xf32>
    %c0_1 = arith.constant 0 : index
    %c0_2 = arith.constant 0 : index
    %1 = vector.load %arg2[%c0_1, %c0_2] : memref<128x128xbf16, #tpu.memory_space<vmem>>, vector<128x128xbf16>
    %c0_3 = arith.constant 0 : index
    %c0_4 = arith.constant 0 : index
    %2 = vector.load %arg3[%c0_3, %c0_4] : memref<1x128xf32, #tpu.memory_space<vmem>>, vector<1x128xf32>
    %3 = arith.truncf %0 : vector<8x128xf32> to vector<8x128xbf16>
    %cst = arith.constant dense<0.000000e+00> : vector<8x128xf32>
    %4 = tpu.matmul %3, %1, %cst {dimension_numbers = #tpu.dot_dimension_numbers<[1], [0], [0], [1], [0, 0, 1, 1], [], []>} : vector<8x128xbf16>, vector<128x128xbf16>, vector<8x128xf32> -> vector<8x128xf32>
    %5 = vector.broadcast %2 : vector<1x128xf32> to vector<8x128xf32>
    %6 = arith.addf %4, %5 : vector<8x128xf32>
    %cst_5 = arith.constant 0.000000e+00 : f32
    %7 = vector.broadcast %cst_5 : f32 to vector<8x128xf32>
    %8 = arith.cmpf oge, %6, %7 : vector<8x128xf32>
    %cst_6 = arith.constant 5.000000e-02 : f32
    %9 = vector.broadcast %cst_6 : f32 to vector<8x128xf32>
    %10 = arith.mulf %9, %6 : vector<8x128xf32>
    %11 = arith.select %8, %6, %10 : vector<8x128xi1>, vector<8x128xf32>
    %c0_7 = arith.constant 0 : index
    %c0_8 = arith.constant 0 : index
    %12 = vector.load %arg4[%c0_7, %c0_8] : memref<128x128xbf16, #tpu.memory_space<vmem>>, vector<128x128xbf16>
    %c0_9 = arith.constant 0 : index
    %c0_10 = arith.constant 0 : index
    %13 = vector.load %arg5[%c0_9, %c0_10] : memref<1x128xf32, #tpu.memory_space<vmem>>, vector<1x128xf32>
    %14 = arith.truncf %11 : vector<8x128xf32> to vector<8x128xbf16>
    %cst_11 = arith.constant dense<0.000000e+00> : vector<8x128xf32>
    %15 = tpu.matmul %14, %12, %cst_11 {dimension_numbers = #tpu.dot_dimension_numbers<[1], [0], [0], [1], [0, 0, 1, 1], [], []>} : vector<8x128xbf16>, vector<128x128xbf16>, vector<8x128xf32> -> vector<8x128xf32>
    %16 = vector.broadcast %13 : vector<1x128xf32> to vector<8x128xf32>
    %17 = arith.addf %15, %16 : vector<8x128xf32>
    %cst_12 = arith.constant 0.000000e+00 : f32
    %18 = vector.broadcast %cst_12 : f32 to vector<8x128xf32>
    %19 = arith.cmpf oge, %17, %18 : vector<8x128xf32>
    %cst_13 = arith.constant 5.000000e-02 : f32
    %20 = vector.broadcast %cst_13 : f32 to vector<8x128xf32>
    %21 = arith.mulf %20, %17 : vector<8x128xf32>
    %22 = arith.select %19, %17, %21 : vector<8x128xi1>, vector<8x128xf32>
    %c0_14 = arith.constant 0 : index
    %c0_15 = arith.constant 0 : index
    %23 = vector.load %arg6[%c0_14, %c0_15] : memref<128x128xbf16, #tpu.memory_space<vmem>>, vector<128x128xbf16>
    %c0_16 = arith.constant 0 : index
    %c0_17 = arith.constant 0 : index
    %24 = vector.load %arg7[%c0_16, %c0_17] : memref<1x128xf32, #tpu.memory_space<vmem>>, vector<1x128xf32>
    %25 = arith.truncf %22 : vector<8x128xf32> to vector<8x128xbf16>
    %cst_18 = arith.constant dense<0.000000e+00> : vector<8x128xf32>
    %26 = tpu.matmul %25, %23, %cst_18 {dimension_numbers = #tpu.dot_dimension_numbers<[1], [0], [0], [1], [0, 0, 1, 1], [], []>} : vector<8x128xbf16>, vector<128x128xbf16>, vector<8x128xf32> -> vector<8x128xf32>
    %27 = vector.broadcast %24 : vector<1x128xf32> to vector<8x128xf32>
    %28 = arith.addf %26, %27 : vector<8x128xf32>
    %c0_19 = arith.constant 0 : index
    %c0_20 = arith.constant 0 : index
    %29 = vector.load %arg8[%c0_19, %c0_20] : memref<8x128xf32, #tpu.memory_space<vmem>>, vector<8x128xf32>
    tpu.vector_store %arg8[%c0_19, %c0_20], %28 {strides = array<i32>} : memref<8x128xf32, #tpu.memory_space<vmem>>, vector<8x128xf32>,
    return
  }
  func.func @transform_0(%arg0: i32) -> (i32, i32) {
    %c0_i32 = arith.constant 0 : i32
    %c0_i32_0 = arith.constant 0 : i32
    return %arg0, %c0_i32 : i32, i32
  }
  func.func @transform_1(%arg0: i32) -> (i32, i32) {
    %c0_i32 = arith.constant 0 : i32
    %c0_i32_0 = arith.constant 0 : i32
    %c0_i32_1 = arith.constant 0 : i32
    return %c0_i32, %c0_i32_0 : i32, i32
  }
  func.func @transform_2(%arg0: i32) -> (i32, i32) {
    %c0_i32 = arith.constant 0 : i32
    %c0_i32_0 = arith.constant 0 : i32
    %c0_i32_1 = arith.constant 0 : i32
    return %c0_i32, %c0_i32_0 : i32, i32
  }
  func.func @transform_3(%arg0: i32) -> (i32, i32) {
    %c0_i32 = arith.constant 0 : i32
    %c0_i32_0 = arith.constant 0 : i32
    %c0_i32_1 = arith.constant 0 : i32
    return %c0_i32, %c0_i32_0 : i32, i32
  }
  func.func @transform_4(%arg0: i32) -> (i32, i32) {
    %c0_i32 = arith.constant 0 : i32
    %c0_i32_0 = arith.constant 0 : i32
    %c0_i32_1 = arith.constant 0 : i32
    return %c0_i32, %c0_i32_0 : i32, i32
  }
  func.func @transform_5(%arg0: i32) -> (i32, i32) {
    %c0_i32 = arith.constant 0 : i32
    %c0_i32_0 = arith.constant 0 : i32
    %c0_i32_1 = arith.constant 0 : i32
    return %c0_i32, %c0_i32_0 : i32, i32
  }
  func.func @transform_6(%arg0: i32) -> (i32, i32) {
    %c0_i32 = arith.constant 0 : i32
    %c0_i32_0 = arith.constant 0 : i32
    %c0_i32_1 = arith.constant 0 : i32
    return %c0_i32, %c0_i32_0 : i32, i32
  }
  func.func @transform_7(%arg0: i32) -> (i32, i32) {
    %c0_i32 = arith.constant 0 : i32
    %c0_i32_0 = arith.constant 0 : i32
    return %arg0, %c0_i32 : i32, i32
  }
}

</mosaic_0001>

<llo_original>
// kernel: tpu_custom_call.1
$region0: #{tpu_custom_call.1}
  #allocation0 [shape = 'u32[]', space=smem, size = 0x4, offset = 0x4, fixed_abs, tag = 'smem constant byte address 0x4 - core index']
  #allocation1 [shape = 'u32[72,128]{1,0:T(1,128)}', space=vmem, size = 0x9000, scoped, tag = 'internal scratch']
  %s0 = inlined_call_operand.hbm [shape: f32[8,128], index: 0, kind: input, shape index: {}]
  %s1 = inlined_call_operand.hbm [shape: bf16[128,128], index: 1, kind: input, shape index: {}]
  %s2 = inlined_call_operand.vmem [shape: f32[1,128], index: 2, kind: input, shape index: {}]
  %s3 = inlined_call_operand.hbm [shape: bf16[128,128], index: 3, kind: input, shape index: {}]
  %s4 = inlined_call_operand.vmem [shape: f32[1,128], index: 4, kind: input, shape index: {}]
  %s5 = inlined_call_operand.hbm [shape: bf16[128,128], index: 5, kind: input, shape index: {}]
  %s6 = inlined_call_operand.vmem [shape: f32[1,128], index: 6, kind: input, shape index: {}]
  %s7 = inlined_call_operand.hbm [shape: f32[8,128], index: 7, kind: output, shape index: {}]
  %s8 = sld [smem:[#allocation0]]
  $region54: #{tpu_custom_call.1} parent=0
    _
  %s10 = ssub.s32 1, %s8
  %s11 = scalar_select 0, %s10, %s8
  $region1: #{tpu_custom_call.1} parent=0
    #allocation2 [shape = 'u8[4096]{0}', space=vmem, size = 0x1000, scoped, tag = 'input window, operand 0, single buffered']
    #allocation3 [shape = 's32[1]{0}', space=sflag, size = 0x4, scoped, tag = 'scoped memory for tpu_custom_call.1']
    #allocation4 [shape = 's32[1]{0}', space=sflag, size = 0x4, scoped, tag = 'scoped memory for tpu_custom_call.1']
    #allocation5 [shape = 'u8[32768]{0}', space=vmem, size = 0x8000, scoped, tag = 'input window, operand 1, single buffered']
    #allocation6 [shape = 's32[1]{0}', space=sflag, size = 0x4, scoped, tag = 'scoped memory for tpu_custom_call.1']
    #allocation7 [shape = 'u8[32768]{0}', space=vmem, size = 0x8000, scoped, tag = 'input window, operand 3, single buffered']
    #allocation8 [shape = 'u8[32768]{0}', space=vmem, size = 0x8000, scoped, tag = 'input window, operand 5, single buffered']
    #allocation9 [shape = 's32[1]{0}', space=sflag, size = 0x4, scoped, tag = 'scoped memory for tpu_custom_call.1']
    #allocation10 [shape = 'u8[4096]{0}', space=vmem, size = 0x1000, scoped, tag = 'output window, operand 0, single buffered']
    %12 = vsyncpa [#allocation3], 0
    %13 = vsyncpa [#allocation6], 0
    %14 = vsyncpa [#allocation9], 0
    %15 = vsyncpa [#allocation4], 0
    // Predicated region
    $region2: #{tpu_custom_call.1} parent=1 // pred_check
      _
    $region3: #{tpu_custom_call.1} parent=1 // pred_check_branch
      %17 = sbr.rel (0) target = $region5
    $region4: #{tpu_custom_call.1} parent=1 // pred_region
      %19 = vsyncadd [#allocation3], 0
      %s21 = sshll.u32 %s0, 4
      %s22 = int_to_ptr.hbm [resolvable:$true] %s21
      %s23 = sshll.u32 [#allocation2], 4
      %s24 = int_to_ptr.vmem [resolvable:$true] %s23
      %26 = dma.hbm_to_vmem [thread:$0]  %s22, 128, %s24, [#allocation3]
    $region5: #{tpu_custom_call.1} parent=1 // pred_fallthru
      _
    // Predicated region
    $region6: #{tpu_custom_call.1} parent=1 // pred_check
      _
    $region7: #{tpu_custom_call.1} parent=1 // pred_check_branch
      %28 = sbr.rel (0) target = $region9
    $region8: #{tpu_custom_call.1} parent=1 // pred_region
      %30 = vsyncadd [#allocation6], 0
      %s31 = sshll.u32 %s1, 4
      %s32 = int_to_ptr.hbm [resolvable:$true] %s31
      %s33 = sshll.u32 [#allocation5], 4
      %s34 = int_to_ptr.vmem [resolvable:$true] %s33
      %39 = dma.hbm_to_vmem [thread:$0]  %s32, 1024, %s34, [#allocation6], 64, 64, 4
    $region9: #{tpu_custom_call.1} parent=1 // pred_fallthru
      _
    // Predicated region
    $region10: #{tpu_custom_call.1} parent=1 // pred_check
      _
    $region11: #{tpu_custom_call.1} parent=1 // pred_check_branch
      %41 = sbr.rel (0) target = $region13
    $region12: #{tpu_custom_call.1} parent=1 // pred_region
      _
    $region13: #{tpu_custom_call.1} parent=1 // pred_fallthru
      _
    // Predicated region
    $region14: #{tpu_custom_call.1} parent=1 // pred_check
      _
    $region15: #{tpu_custom_call.1} parent=1 // pred_check_branch
      %43 = sbr.rel (0) target = $region17
    $region16: #{tpu_custom_call.1} parent=1 // pred_region
      %45 = vsyncadd [#allocation6], 0
      %s46 = sshll.u32 %s3, 4
      %s47 = int_to_ptr.hbm [resolvable:$true] %s46
      %s48 = sshll.u32 [#allocation7], 4
      %s49 = int_to_ptr.vmem [resolvable:$true] %s48
      %54 = dma.hbm_to_vmem [thread:$0]  %s47, 1024, %s49, [#allocation6], 64, 64, 4
    $region17: #{tpu_custom_call.1} parent=1 // pred_fallthru
      _
    // Predicated region
    $region18: #{tpu_custom_call.1} parent=1 // pred_check
      _
    $region19: #{tpu_custom_call.1} parent=1 // pred_check_branch
      %56 = sbr.rel (0) target = $region21
    $region20: #{tpu_custom_call.1} parent=1 // pred_region
      _
    $region21: #{tpu_custom_call.1} parent=1 // pred_fallthru
      _
    // Predicated region
    $region22: #{tpu_custom_call.1} parent=1 // pred_check
      _
    $region23: #{tpu_custom_call.1} parent=1 // pred_check_branch
      %58 = sbr.rel (0) target = $region25
    $region24: #{tpu_custom_call.1} parent=1 // pred_region
      %60 = vsyncadd [#allocation9], 0
      %s61 = sshll.u32 %s5, 4
      %s62 = int_to_ptr.hbm [resolvable:$true] %s61
      %s63 = sshll.u32 [#allocation8], 4
      %s64 = int_to_ptr.vmem [resolvable:$true] %s63
      %69 = dma.hbm_to_vmem [thread:$0]  %s62, 1024, %s64, [#allocation9], 64, 64, 4
    $region25: #{tpu_custom_call.1} parent=1 // pred_fallthru
      _
    // Predicated region
    $region26: #{tpu_custom_call.1} parent=1 // pred_check
      _
    $region27: #{tpu_custom_call.1} parent=1 // pred_check_branch
      %71 = sbr.rel (0) target = $region29
    $region28: #{tpu_custom_call.1} parent=1 // pred_region
      _
    $region29: #{tpu_custom_call.1} parent=1 // pred_fallthru
      _
    // Predicated region
    $region30: #{tpu_custom_call.1} parent=1 // pred_check
      _
    $region31: #{tpu_custom_call.1} parent=1 // pred_check_branch
      %73 = sbr.rel (0) target = $region33
    $region32: #{tpu_custom_call.1} parent=1 // pred_region
      %75 = dma.done [#allocation3], 128
    $region33: #{tpu_custom_call.1} parent=1 // pred_fallthru
      _
    // Predicated region
    $region34: #{tpu_custom_call.1} parent=1 // pred_check
      _
    $region35: #{tpu_custom_call.1} parent=1 // pred_check_branch
      %77 = sbr.rel (0) target = $region37
    $region36: #{tpu_custom_call.1} parent=1 // pred_region
      %79 = dma.done [#allocation6], 1024
    $region37: #{tpu_custom_call.1} parent=1 // pred_fallthru
      _
    // Predicated region
    $region38: #{tpu_custom_call.1} parent=1 // pred_check
      _
    $region39: #{tpu_custom_call.1} parent=1 // pred_check_branch
      %81 = sbr.rel (0) target = $region41
    $region40: #{tpu_custom_call.1} parent=1 // pred_region
      %83 = dma.done [#allocation6], 1024
    $region41: #{tpu_custom_call.1} parent=1 // pred_fallthru
      _
    // Predicated region
    $region42: #{tpu_custom_call.1} parent=1 // pred_check
      _
    $region43: #{tpu_custom_call.1} parent=1 // pred_check_branch
      %85 = sbr.rel (0) target = $region45
    $region44: #{tpu_custom_call.1} parent=1 // pred_region
      %87 = dma.done [#allocation9], 1024
    $region45: #{tpu_custom_call.1} parent=1 // pred_fallthru
      _
    %v88 = vld [vmem:[#allocation2] sm:$0xff]
    %v89 = vld [vmem:[#allocation5] sm:$0xf]
    %v90 = vld [vmem:[#allocation5 + $0x4] sm:$0xf]
    %v91 = vld [vmem:[#allocation5 + $0x8] sm:$0xf]
    %v92 = vld [vmem:[#allocation5 + $0xc] sm:$0xf]
    %v93 = vld [vmem:[#allocation5 + $0x10] sm:$0xf]
    %v94 = vld [vmem:[#allocation5 + $0x14] sm:$0xf]
    %v95 = vld [vmem:[#allocation5 + $0x18] sm:$0xf]
    %v96 = vld [vmem:[#allocation5 + $0x1c] sm:$0xf]
    %v97 = vld [vmem:[#allocation5 + $0x20] sm:$0xf]
    %v98 = vld [vmem:[#allocation5 + $0x24] sm:$0xf]
    %v99 = vld [vmem:[#allocation5 + $0x28] sm:$0xf]
    %v100 = vld [vmem:[#allocation5 + $0x2c] sm:$0xf]
    %v101 = vld [vmem:[#allocation5 + $0x30] sm:$0xf]
    %v102 = vld [vmem:[#allocation5 + $0x34] sm:$0xf]
    %v103 = vld [vmem:[#allocation5 + $0x38] sm:$0xf]
    %v104 = vld [vmem:[#allocation5 + $0x3c] sm:$0xf]
    %v105 = vld [vmem:[%s2] sm:$0x1]
    %v106 = vpack.c.bf16 %v88, %v88
    %v108 = vperm.slane %v105, 0
    %v126 = vunpack.c.l.b16 %v89
    %v127 = vunpack.c.l.b16 %v90
    %v128 = vunpack.c.l.b16 %v91
    %v129 = vunpack.c.l.b16 %v92
    %v130 = vunpack.c.l.b16 %v93
    %v131 = vunpack.c.l.b16 %v94
    %v132 = vunpack.c.l.b16 %v95
    %v133 = vunpack.c.l.b16 %v96
    %v134 = vunpack.c.l.b16 %v97
    %v135 = vunpack.c.l.b16 %v98
    %v136 = vunpack.c.l.b16 %v99
    %v137 = vunpack.c.l.b16 %v100
    %v138 = vunpack.c.l.b16 %v101
    %v139 = vunpack.c.l.b16 %v102
    %v140 = vunpack.c.l.b16 %v103
    %v141 = vunpack.c.l.b16 %v104
    %v142 = vpack.c.b16 %v127, %v126
    %v143 = vpack.c.b16 %v129, %v128
    %v144 = vpack.c.b16 %v131, %v130
    %v145 = vpack.c.b16 %v133, %v132
    %v146 = vpack.c.b16 %v135, %v134
    %v147 = vpack.c.b16 %v137, %v136
    %v148 = vpack.c.b16 %v139, %v138
    %v149 = vpack.c.b16 %v141, %v140
    %158 = vmatpush.bf16.msra.mxu0 %v149
    %159 = vmatpush.bf16.msra.mxu0 %v148
    %160 = vmatpush.bf16.msra.mxu0 %v147
    %161 = vmatpush.bf16.msra.mxu0 %v146
    %162 = vmatpush.bf16.msra.mxu0 %v145
    %163 = vmatpush.bf16.msra.mxu0 %v144
    %164 = vmatpush.bf16.msra.mxu0 %v143
    %165 = vmatpush.bf16.msra.mxu0 %v142
    %166 = vmatmul.bf16.gmra.mxu0 %v106
    %v167 = vpop.f32.mrf.mxu0
    %v168 = vadd.f32 %v108, %v167
    %v169 = vpop.f32.mrf.mxu0
    %170 = vdwg.mxu0
    %vm171 = vcmp.ge.f32.partialorder %v168, 0.0
    %v172 = vmul.f32 %v168, 0.05
    %v173 = vsel %vm171, %v168, %v172
    %v174 = vld [vmem:[#allocation7] sm:$0xf]
    %v175 = vld [vmem:[#allocation7 + $0x4] sm:$0xf]
    %v176 = vld [vmem:[#allocation7 + $0x8] sm:$0xf]
    %v177 = vld [vmem:[#allocation7 + $0xc] sm:$0xf]
    %v178 = vld [vmem:[#allocation7 + $0x10] sm:$0xf]
    %v179 = vld [vmem:[#allocation7 + $0x14] sm:$0xf]
    %v180 = vld [vmem:[#allocation7 + $0x18] sm:$0xf]
    %v181 = vld [vmem:[#allocation7 + $0x1c] sm:$0xf]
    %v182 = vld [vmem:[#allocation7 + $0x20] sm:$0xf]
    %v183 = vld [vmem:[#allocation7 + $0x24] sm:$0xf]
    %v184 = vld [vmem:[#allocation7 + $0x28] sm:$0xf]
    %v185 = vld [vmem:[#allocation7 + $0x2c] sm:$0xf]
    %v186 = vld [vmem:[#allocation7 + $0x30] sm:$0xf]
    %v187 = vld [vmem:[#allocation7 + $0x34] sm:$0xf]
    %v188 = vld [vmem:[#allocation7 + $0x38] sm:$0xf]
    %v189 = vld [vmem:[#allocation7 + $0x3c] sm:$0xf]
    %v190 = vld [vmem:[%s4] sm:$0x1]
    %v191 = vpack.c.bf16 %v173, %v173
    %v193 = vperm.slane %v190, 0
    %v211 = vunpack.c.l.b16 %v174
    %v212 = vunpack.c.l.b16 %v175
    %v213 = vunpack.c.l.b16 %v176
    %v214 = vunpack.c.l.b16 %v177
    %v215 = vunpack.c.l.b16 %v178
    %v216 = vunpack.c.l.b16 %v179
    %v217 = vunpack.c.l.b16 %v180
    %v218 = vunpack.c.l.b16 %v181
    %v219 = vunpack.c.l.b16 %v182
    %v220 = vunpack.c.l.b16 %v183
    %v221 = vunpack.c.l.b16 %v184
    %v222 = vunpack.c.l.b16 %v185
    %v223 = vunpack.c.l.b16 %v186
    %v224 = vunpack.c.l.b16 %v187
    %v225 = vunpack.c.l.b16 %v188
    %v226 = vunpack.c.l.b16 %v189
    %v227 = vpack.c.b16 %v212, %v211
    %v228 = vpack.c.b16 %v214, %v213
    %v229 = vpack.c.b16 %v216, %v215
    %v230 = vpack.c.b16 %v218, %v217
    %v231 = vpack.c.b16 %v220, %v219
    %v232 = vpack.c.b16 %v222, %v221
    %v233 = vpack.c.b16 %v224, %v223
    %v234 = vpack.c.b16 %v226, %v225
    %243 = vmatpush.bf16.msra.mxu0 %v234
    %244 = vmatpush.bf16.msra.mxu0 %v233
    %245 = vmatpush.bf16.msra.mxu0 %v232
    %246 = vmatpush.bf16.msra.mxu0 %v231
    %247 = vmatpush.bf16.msra.mxu0 %v230
    %248 = vmatpush.bf16.msra.mxu0 %v229
    %249 = vmatpush.bf16.msra.mxu0 %v228
    %250 = vmatpush.bf16.msra.mxu0 %v227
    %251 = vmatmul.bf16.gmra.mxu0 %v191
    %v252 = vpop.f32.mrf.mxu0
    %v253 = vadd.f32 %v193, %v252
    %v254 = vpop.f32.mrf.mxu0
    %255 = vdwg.mxu0
    %vm256 = vcmp.ge.f32.partialorder %v253, 0.0
    %v257 = vmul.f32 %v253, 0.05
    %v258 = vsel %vm256, %v253, %v257
    %v259 = vld [vmem:[#allocation8] sm:$0xf]
    %v260 = vld [vmem:[#allocation8 + $0x4] sm:$0xf]
    %v261 = vld [vmem:[#allocation8 + $0x8] sm:$0xf]
    %v262 = vld [vmem:[#allocation8 + $0xc] sm:$0xf]
    %v263 = vld [vmem:[#allocation8 + $0x10] sm:$0xf]
    %v264 = vld [vmem:[#allocation8 + $0x14] sm:$0xf]
    %v265 = vld [vmem:[#allocation8 + $0x18] sm:$0xf]
    %v266 = vld [vmem:[#allocation8 + $0x1c] sm:$0xf]
    %v267 = vld [vmem:[#allocation8 + $0x20] sm:$0xf]
    %v268 = vld [vmem:[#allocation8 + $0x24] sm:$0xf]
    %v269 = vld [vmem:[#allocation8 + $0x28] sm:$0xf]
    %v270 = vld [vmem:[#allocation8 + $0x2c] sm:$0xf]
    %v271 = vld [vmem:[#allocation8 + $0x30] sm:$0xf]
    %v272 = vld [vmem:[#allocation8 + $0x34] sm:$0xf]
    %v273 = vld [vmem:[#allocation8 + $0x38] sm:$0xf]
    %v274 = vld [vmem:[#allocation8 + $0x3c] sm:$0xf]
    %v275 = vld [vmem:[%s6] sm:$0x1]
    %v276 = vpack.c.bf16 %v258, %v258
    %v278 = vperm.slane %v275, 0
    %v296 = vunpack.c.l.b16 %v259
    %v297 = vunpack.c.l.b16 %v260
    %v298 = vunpack.c.l.b16 %v261
    %v299 = vunpack.c.l.b16 %v262
    %v300 = vunpack.c.l.b16 %v263
    %v301 = vunpack.c.l.b16 %v264
    %v302 = vunpack.c.l.b16 %v265
    %v303 = vunpack.c.l.b16 %v266
    %v304 = vunpack.c.l.b16 %v267
    %v305 = vunpack.c.l.b16 %v268
    %v306 = vunpack.c.l.b16 %v269
    %v307 = vunpack.c.l.b16 %v270
    %v308 = vunpack.c.l.b16 %v271
    %v309 = vunpack.c.l.b16 %v272
    %v310 = vunpack.c.l.b16 %v273
    %v311 = vunpack.c.l.b16 %v274
    %v312 = vpack.c.b16 %v297, %v296
    %v313 = vpack.c.b16 %v299, %v298
    %v314 = vpack.c.b16 %v301, %v300
    %v315 = vpack.c.b16 %v303, %v302
    %v316 = vpack.c.b16 %v305, %v304
    %v317 = vpack.c.b16 %v307, %v306
    %v318 = vpack.c.b16 %v309, %v308
    %v319 = vpack.c.b16 %v311, %v310
    %328 = vmatpush.bf16.msra.mxu0 %v319
    %329 = vmatpush.bf16.msra.mxu0 %v318
    %330 = vmatpush.bf16.msra.mxu0 %v317
    %331 = vmatpush.bf16.msra.mxu0 %v316
    %332 = vmatpush.bf16.msra.mxu0 %v315
    %333 = vmatpush.bf16.msra.mxu0 %v314
    %334 = vmatpush.bf16.msra.mxu0 %v313
    %335 = vmatpush.bf16.msra.mxu0 %v312
    %336 = vmatmul.bf16.gmra.mxu0 %v276
    %v337 = vpop.f32.mrf.mxu0
    %v338 = vadd.f32 %v278, %v337
    %v339 = vpop.f32.mrf.mxu0
    %340 = vdwg.mxu0
    %341 = vst [vmem:[#allocation10] sm:$0xff] %v338
    // Predicated region
    $region46: #{tpu_custom_call.1} parent=1 // pred_check
      _
    $region47: #{tpu_custom_call.1} parent=1 // pred_check_branch
      %343 = sbr.rel (0) target = $region49
    $region48: #{tpu_custom_call.1} parent=1 // pred_region
      %345 = vsyncadd [#allocation4], 0
      %s347 = sshll.u32 [#allocation10], 4
      %s348 = int_to_ptr.vmem [resolvable:$true] %s347
      %s349 = sshll.u32 %s7, 4
      %s350 = int_to_ptr.hbm [resolvable:$true] %s349
      %352 = dma.vmem_to_hbm [thread:$0]  %s348, 128, %s350, [#allocation4]
    $region49: #{tpu_custom_call.1} parent=1 // pred_fallthru
      _
    // Predicated region
    $region50: #{tpu_custom_call.1} parent=1 // pred_check
      _
    $region51: #{tpu_custom_call.1} parent=1 // pred_check_branch
      %354 = sbr.rel (0) target = $region53
    $region52: #{tpu_custom_call.1} parent=1 // pred_region
      %356 = dma.done [#allocation4], 128
    $region53: #{tpu_custom_call.1} parent=1 // pred_fallthru
      _
    %357 = vsyncpa [#allocation3], 1
    %358 = vsyncpa [#allocation6], 1
    %359 = vsyncpa [#allocation9], 1
    %360 = vsyncpa [#allocation4], 1

</llo_original>
